<compile_context>
chip_gen: v5e
topology: v5e:2x2
jax: 0.10.0
libtpu: 0.0.40
codegen_flags: <defaults>
</compile_context>

<pallas_src>
import jax
import jax.numpy as jnp
from jax.experimental import pallas as pl
from jax.experimental.pallas import tpu as pltpu

STATE_SIZE = 4      # CartPole observation dim
ACTION_SIZE = 2     # CartPole action dim
H1, H2, H3 = 64, 128, 64

LANE = 128          # hidden feature dims padded to the 128-lane width
X_PAD = 8           # state dim padded 4 -> 8 lanes (narrow input stream)
Q_PAD = 8           # action dim padded 2 -> 8 lanes (narrow output stream)
MAX_TILE_B = 2048   # cap on batch tile


def _round_up(n, m):
    return ((n + m - 1) // m) * m


def _choose_tile_b(B):
    """Right-size the batch tile: tiny RL batches get a single exact tile; large
    batches get >=2 tiles (dual-TC sharding on v7x), capped at MAX_TILE_B."""
    b_round = _round_up(max(B, 1), 8)
    if b_round <= 1024:
        return b_round
    return min(MAX_TILE_B, _round_up(pl.cdiv(b_round, 2), 8))


def _dqn_kernel(x_ref, w1_ref, w2_ref, w3_ref, w4_ref, b123_ref, b4_ref, out_ref):
    """One batch tile of the 4-layer MLP.

    x_ref   : [tile_b, 8]   bf16  (state zero-padded 4 -> 8)
    w1_ref  : [8, 128]      bf16  (stored [in, out], zero-padded)
    w2_ref  : [128, 128]    bf16
    w3_ref  : [128, 128]    bf16
    w4_ref  : [128, 8]      bf16
    b123_ref: [3, 128]      f32   (row l = bias of layer l+1, zero-padded)
    b4_ref  : [1, 8]        f32
    out_ref : [tile_b, 8]   f32   (Q-values live in lanes [:ACTION_SIZE])
    """
    # fc1 + relu
    h = jnp.dot(x_ref[...], w1_ref[...],
                preferred_element_type=jnp.float32) + b123_ref[0:1, :]
    h = jnp.maximum(h, 0.0).astype(jnp.bfloat16)
    # fc2 + relu
    h = jnp.dot(h, w2_ref[...],
                preferred_element_type=jnp.float32) + b123_ref[1:2, :]
    h = jnp.maximum(h, 0.0).astype(jnp.bfloat16)
    # fc3 + relu
    h = jnp.dot(h, w3_ref[...],
                preferred_element_type=jnp.float32) + b123_ref[2:3, :]
    h = jnp.maximum(h, 0.0).astype(jnp.bfloat16)
    # fc4 (no activation)
    q = jnp.dot(h, w4_ref[...],
                preferred_element_type=jnp.float32) + b4_ref[...]
    out_ref[...] = q


def _pad_to(a, shape):
    return jnp.pad(a, [(0, t - s) for s, t in zip(a.shape, shape)])


def prepare_params(params):
    """One-time packing (call once per parameter update, NOT per forward):
    pad weights to MXU-friendly tiles, cast to bf16, stack the hidden biases."""
    (w1, b1), (w2, b2), (w3, b3), (w4, b4) = (
        params[n] for n in ("fc1", "fc2", "fc3", "fc4"))
    w1p = _pad_to(w1.astype(jnp.bfloat16), (X_PAD, LANE))
    w2p = _pad_to(w2.astype(jnp.bfloat16), (LANE, LANE))
    w3p = _pad_to(w3.astype(jnp.bfloat16), (LANE, LANE))
    w4p = _pad_to(w4.astype(jnp.bfloat16), (LANE, Q_PAD))
    b123 = jnp.stack([_pad_to(b1.astype(jnp.float32), (LANE,)),
                      _pad_to(b2.astype(jnp.float32), (LANE,)),
                      _pad_to(b3.astype(jnp.float32), (LANE,))])
    b4p = _pad_to(b4.astype(jnp.float32), (Q_PAD,)).reshape(1, Q_PAD)
    return (w1p, w2p, w3p, w4p, b123, b4p)


@jax.jit
def dqn_forward(x, prepped):
    """x: [B, STATE_SIZE] f32; prepped: output of prepare_params()."""
    w1, w2, w3, w4, b123, b4 = prepped
    B = x.shape[0]
    tile_b = _choose_tile_b(B)
    b_pad = pl.cdiv(B, tile_b) * tile_b

    # Narrow (8-lane) bf16 input stream; padded rows/lanes are zero.
    x_p = jnp.zeros((b_pad, X_PAD), jnp.bfloat16).at[:B, :STATE_SIZE].set(
        x.astype(jnp.bfloat16))

    x_spec = pl.BlockSpec((tile_b, X_PAD), lambda i: (i, 0))    # streamed over batch
    out_spec = pl.BlockSpec((tile_b, Q_PAD), lambda i: (i, 0))  # narrow output stream
    const2 = lambda i: (0, 0)                                   # VMEM-resident params

    out = pl.pallas_call(
        _dqn_kernel,
        out_shape=jax.ShapeDtypeStruct((b_pad, Q_PAD), jnp.float32),
        grid=(b_pad // tile_b,),
        in_specs=[
            x_spec,
            pl.BlockSpec((X_PAD, LANE), const2),   # w1
            pl.BlockSpec((LANE, LANE), const2),    # w2
            pl.BlockSpec((LANE, LANE), const2),    # w3
            pl.BlockSpec((LANE, Q_PAD), const2),   # w4
            pl.BlockSpec((3, LANE), const2),       # stacked hidden biases
            pl.BlockSpec((1, Q_PAD), const2),      # output bias
        ],
        out_specs=out_spec,
        compiler_params=pltpu.CompilerParams(
            dimension_semantics=("parallel",)),    # dual-TC sharding on v7x
    )(x_p, w1, w2, w3, w4, b123, b4)

    return out[:B, :ACTION_SIZE]


def init_params(key):
    """Deterministic synthetic parameters matching DQNNetwork's layer shapes (torch init scale)."""
    dims = [(STATE_SIZE, H1), (H1, H2), (H2, H3), (H3, ACTION_SIZE)]
    names = ["fc1", "fc2", "fc3", "fc4"]
    params = {}
    for name, (fan_in, fan_out) in zip(names, dims):
        key, kw, kb = jax.random.split(key, 3)
        bound = 1.0 / jnp.sqrt(fan_in)
        w = jax.random.uniform(kw, (fan_in, fan_out), jnp.float32, -bound, bound)
        b = jax.random.uniform(kb, (fan_out,), jnp.float32, -bound, bound)
        params[name] = (w, b)
    return params


def reference_forward(x, params):
    """Pure-JAX reference using the same bf16-weight / f32-accumulate recipe as the kernel."""
    h = x.astype(jnp.bfloat16)
    for name in ("fc1", "fc2", "fc3"):
        w, b = params[name]
        h = jnp.dot(h, w.astype(jnp.bfloat16),
                    preferred_element_type=jnp.float32) + b
        h = jnp.maximum(h, 0.0).astype(jnp.bfloat16)
    w, b = params["fc4"]
    return jnp.dot(h, w.astype(jnp.bfloat16),
                   preferred_element_type=jnp.float32) + b


if __name__ == "__main__":
    key = jax.random.PRNGKey(0)
    key, kx = jax.random.split(key)
    params = init_params(key)
    prepped = prepare_params(params)   # hoisted out of the forward path

    # Latency-critical acting batch (tiny): tile_b == 8, no dead padding.
    batch = 8
    x = jax.random.normal(kx, (batch, STATE_SIZE), jnp.float32)
    q_kernel = dqn_forward(x, prepped)
    jax.block_until_ready(q_kernel)
    q_ref = reference_forward(x, params)
    assert q_kernel.shape == (batch, ACTION_SIZE)
    assert jnp.allclose(q_kernel, q_ref, atol=1e-3, rtol=1e-3), (
        float(jnp.max(jnp.abs(q_kernel - q_ref))))

    # Training-style batch (non-multiple of 8, 2-tile grid for dual-TC sharding).
    key, kx2 = jax.random.split(key)
    batch_big = 1100
    x_big = jax.random.normal(kx2, (batch_big, STATE_SIZE), jnp.float32)
    q_big = dqn_forward(x_big, prepped)
    jax.block_until_ready(q_big)
    q_big_ref = reference_forward(x_big, params)
    assert q_big.shape == (batch_big, ACTION_SIZE)
    assert jnp.allclose(q_big, q_big_ref, atol=1e-3, rtol=1e-3), (
        float(jnp.max(jnp.abs(q_big - q_big_ref))))

    print("KERNEL_OK")
</pallas_src>

<mosaic_0001>
module attributes {stable_mosaic.version = 11 : i64} {
  func.func @_dqn_kernel(%arg0: i32, %arg1: memref<8x8xbf16, #tpu.memory_space<vmem>>, %arg2: memref<8x128xbf16, #tpu.memory_space<vmem>>, %arg3: memref<128x128xbf16, #tpu.memory_space<vmem>>, %arg4: memref<128x128xbf16, #tpu.memory_space<vmem>>, %arg5: memref<128x8xbf16, #tpu.memory_space<vmem>>, %arg6: memref<3x128xf32, #tpu.memory_space<vmem>>, %arg7: memref<1x8xf32, #tpu.memory_space<vmem>>, %arg8: memref<8x8xf32, #tpu.memory_space<vmem>>) attributes {dimension_semantics = [#tpu.dimension_semantics<parallel>], iteration_bounds = array<i64: 1>, scalar_prefetch = 0 : i64, scratch_operands = 0 : i64, tpu.core_type = #tpu.core_type<tc>, window_params = [{transform_indices = @transform_0, window_bounds = array<i64: 8, 8>}, {pipeline_mode = #tpu.pipeline_mode<synchronous>, transform_indices = @transform_1, window_bounds = array<i64: 8, 128>}, {pipeline_mode = #tpu.pipeline_mode<synchronous>, transform_indices = @transform_2, window_bounds = array<i64: 128, 128>}, {pipeline_mode = #tpu.pipeline_mode<synchronous>, transform_indices = @transform_3, window_bounds = array<i64: 128, 128>}, {pipeline_mode = #tpu.pipeline_mode<synchronous>, transform_indices = @transform_4, window_bounds = array<i64: 128, 8>}, {pipeline_mode = #tpu.pipeline_mode<synchronous>, transform_indices = @transform_5, window_bounds = array<i64: 3, 128>}, {pipeline_mode = #tpu.pipeline_mode<synchronous>, transform_indices = @transform_6, window_bounds = array<i64: 1, 8>}, {transform_indices = @transform_7, window_bounds = array<i64: 8, 8>}]} {
    %c0 = arith.constant 0 : index
    %c0_0 = arith.constant 0 : index
    %0 = vector.load %arg1[%c0, %c0_0] : memref<8x8xbf16, #tpu.memory_space<vmem>>, vector<8x8xbf16>
    %c0_1 = arith.constant 0 : index
    %c0_2 = arith.constant 0 : index
    %1 = vector.load %arg2[%c0_1, %c0_2] : memref<8x128xbf16, #tpu.memory_space<vmem>>, vector<8x128xbf16>
    %cst = arith.constant dense<0.000000e+00> : vector<8x128xf32>
    %2 = tpu.matmul %0, %1, %cst {dimension_numbers = #tpu.dot_dimension_numbers<[1], [0], [0], [1], [0, 0, 1, 1], [], []>} : vector<8x8xbf16>, vector<8x128xbf16>, vector<8x128xf32> -> vector<8x128xf32>
    %c0_3 = arith.constant 0 : index
    %c0_4 = arith.constant 0 : index
    %3 = vector.load %arg6[%c0_3, %c0_4] : memref<3x128xf32, #tpu.memory_space<vmem>>, vector<1x128xf32>
    %4 = vector.broadcast %3 : vector<1x128xf32> to vector<8x128xf32>
    %5 = arith.addf %2, %4 : vector<8x128xf32>
    %cst_5 = arith.constant 0.000000e+00 : f32
    %6 = vector.broadcast %cst_5 : f32 to vector<8x128xf32>
    %7 = arith.maximumf %5, %6 : vector<8x128xf32>
    %8 = arith.truncf %7 : vector<8x128xf32> to vector<8x128xbf16>
    %c0_6 = arith.constant 0 : index
    %c0_7 = arith.constant 0 : index
    %9 = vector.load %arg3[%c0_6, %c0_7] : memref<128x128xbf16, #tpu.memory_space<vmem>>, vector<128x128xbf16>
    %cst_8 = arith.constant dense<0.000000e+00> : vector<8x128xf32>
    %10 = tpu.matmul %8, %9, %cst_8 {dimension_numbers = #tpu.dot_dimension_numbers<[1], [0], [0], [1], [0, 0, 1, 1], [], []>} : vector<8x128xbf16>, vector<128x128xbf16>, vector<8x128xf32> -> vector<8x128xf32>
    %c1 = arith.constant 1 : index
    %c0_9 = arith.constant 0 : index
    %11 = vector.load %arg6[%c1, %c0_9] : memref<3x128xf32, #tpu.memory_space<vmem>>, vector<1x128xf32>
    %12 = vector.broadcast %11 : vector<1x128xf32> to vector<8x128xf32>
    %13 = arith.addf %10, %12 : vector<8x128xf32>
    %cst_10 = arith.constant 0.000000e+00 : f32
    %14 = vector.broadcast %cst_10 : f32 to vector<8x128xf32>
    %15 = arith.maximumf %13, %14 : vector<8x128xf32>
    %16 = arith.truncf %15 : vector<8x128xf32> to vector<8x128xbf16>
    %c0_11 = arith.constant 0 : index
    %c0_12 = arith.constant 0 : index
    %17 = vector.load %arg4[%c0_11, %c0_12] : memref<128x128xbf16, #tpu.memory_space<vmem>>, vector<128x128xbf16>
    %cst_13 = arith.constant dense<0.000000e+00> : vector<8x128xf32>
    %18 = tpu.matmul %16, %17, %cst_13 {dimension_numbers = #tpu.dot_dimension_numbers<[1], [0], [0], [1], [0, 0, 1, 1], [], []>} : vector<8x128xbf16>, vector<128x128xbf16>, vector<8x128xf32> -> vector<8x128xf32>
    %c2 = arith.constant 2 : index
    %c0_14 = arith.constant 0 : index
    %19 = vector.load %arg6[%c2, %c0_14] : memref<3x128xf32, #tpu.memory_space<vmem>>, vector<1x128xf32>
    %20 = vector.broadcast %19 : vector<1x128xf32> to vector<8x128xf32>
    %21 = arith.addf %18, %20 : vector<8x128xf32>
    %cst_15 = arith.constant 0.000000e+00 : f32
    %22 = vector.broadcast %cst_15 : f32 to vector<8x128xf32>
    %23 = arith.maximumf %21, %22 : vector<8x128xf32>
    %24 = arith.truncf %23 : vector<8x128xf32> to vector<8x128xbf16>
    %c0_16 = arith.constant 0 : index
    %c0_17 = arith.constant 0 : index
    %25 = vector.load %arg5[%c0_16, %c0_17] : memref<128x8xbf16, #tpu.memory_space<vmem>>, vector<128x8xbf16>
    %cst_18 = arith.constant dense<0.000000e+00> : vector<8x8xf32>
    %26 = tpu.matmul %24, %25, %cst_18 {dimension_numbers = #tpu.dot_dimension_numbers<[1], [0], [0], [1], [0, 0, 1, 1], [], []>} : vector<8x128xbf16>, vector<128x8xbf16>, vector<8x8xf32> -> vector<8x8xf32>
    %c0_19 = arith.constant 0 : index
    %c0_20 = arith.constant 0 : index
    %27 = vector.load %arg7[%c0_19, %c0_20] : memref<1x8xf32, #tpu.memory_space<vmem>>, vector<1x8xf32>
    %28 = vector.broadcast %27 : vector<1x8xf32> to vector<8x8xf32>
    %29 = arith.addf %26, %28 : vector<8x8xf32>
    %c0_21 = arith.constant 0 : index
    %c0_22 = arith.constant 0 : index
    %30 = vector.load %arg8[%c0_21, %c0_22] : memref<8x8xf32, #tpu.memory_space<vmem>>, vector<8x8xf32>
    tpu.vector_store %arg8[%c0_21, %c0_22], %29 {strides = array<i32>} : memref<8x8xf32, #tpu.memory_space<vmem>>, vector<8x8xf32>,
    return
  }
  func.func @transform_0(%arg0: i32) -> (i32, i32) {
    %c0_i32 = arith.constant 0 : i32
    %c0_i32_0 = arith.constant 0 : i32
    return %arg0, %c0_i32 : i32, i32
  }
  func.func @transform_1(%arg0: i32) -> (i32, i32) {
    %c0_i32 = arith.constant 0 : i32
    %c0_i32_0 = arith.constant 0 : i32
    %c0_i32_1 = arith.constant 0 : i32
    return %c0_i32, %c0_i32_0 : i32, i32
  }
  func.func @transform_2(%arg0: i32) -> (i32, i32) {
    %c0_i32 = arith.constant 0 : i32
    %c0_i32_0 = arith.constant 0 : i32
    %c0_i32_1 = arith.constant 0 : i32
    return %c0_i32, %c0_i32_0 : i32, i32
  }
  func.func @transform_3(%arg0: i32) -> (i32, i32) {
    %c0_i32 = arith.constant 0 : i32
    %c0_i32_0 = arith.constant 0 : i32
    %c0_i32_1 = arith.constant 0 : i32
    return %c0_i32, %c0_i32_0 : i32, i32
  }
  func.func @transform_4(%arg0: i32) -> (i32, i32) {
    %c0_i32 = arith.constant 0 : i32
    %c0_i32_0 = arith.constant 0 : i32
    %c0_i32_1 = arith.constant 0 : i32
    return %c0_i32, %c0_i32_0 : i32, i32
  }
  func.func @transform_5(%arg0: i32) -> (i32, i32) {
    %c0_i32 = arith.constant 0 : i32
    %c0_i32_0 = arith.constant 0 : i32
    %c0_i32_1 = arith.constant 0 : i32
    return %c0_i32, %c0_i32_0 : i32, i32
  }
  func.func @transform_6(%arg0: i32) -> (i32, i32) {
    %c0_i32 = arith.constant 0 : i32
    %c0_i32_0 = arith.constant 0 : i32
    %c0_i32_1 = arith.constant 0 : i32
    return %c0_i32, %c0_i32_0 : i32, i32
  }
  func.func @transform_7(%arg0: i32) -> (i32, i32) {
    %c0_i32 = arith.constant 0 : i32
    %c0_i32_0 = arith.constant 0 : i32
    return %arg0, %c0_i32 : i32, i32
  }
}

</mosaic_0001>

<llo_original>
// kernel: dqn_forward.1
$region0: #{dqn_forward.1}
  #allocation0 [shape = 'u32[]', space=smem, size = 0x4, offset = 0x4, fixed_abs, tag = 'smem constant byte address 0x4 - core index']
  #allocation1 [shape = 'u32[72,128]{1,0:T(1,128)}', space=vmem, size = 0x9000, scoped, tag = 'internal scratch']
  %s0 = inlined_call_operand.vmem [shape: bf16[8,8], index: 0, kind: input, shape index: {}]
  %s1 = inlined_call_operand.vmem [shape: bf16[8,128], index: 1, kind: input, shape index: {}]
  %s2 = inlined_call_operand.vmem [shape: bf16[128,128], index: 2, kind: input, shape index: {}]
  %s3 = inlined_call_operand.hbm [shape: bf16[128,128], index: 3, kind: input, shape index: {}]
  %s4 = inlined_call_operand.vmem [shape: bf16[128,8], index: 4, kind: input, shape index: {}]
  %s5 = inlined_call_operand.vmem [shape: f32[3,128], index: 5, kind: input, shape index: {}]
  %s6 = inlined_call_operand.vmem [shape: f32[1,8], index: 6, kind: input, shape index: {}]
  %s7 = inlined_call_operand.vmem [shape: f32[8,8], index: 7, kind: output, shape index: {}]
  %s8 = sld [smem:[#allocation0]]
  $region42: #{dqn_forward.1} parent=0
    _
  %s10 = ssub.s32 1, %s8
  %s11 = scalar_select 0, %s10, %s8
  $region1: #{dqn_forward.1} parent=0
    #allocation2 [shape = 'u8[32768]{0}', space=vmem, size = 0x8000, scoped, tag = 'input window, operand 3, single buffered']
    #allocation3 [shape = 's32[1]{0}', space=sflag, size = 0x4, scoped, tag = 'scoped memory for dqn_forward.1']
    %12 = vsyncpa [#allocation3], 0
    // Predicated region
    $region2: #{dqn_forward.1} parent=1 // pred_check
      _
    $region3: #{dqn_forward.1} parent=1 // pred_check_branch
      %14 = sbr.rel (0) target = $region5
    $region4: #{dqn_forward.1} parent=1 // pred_region
      _
    $region5: #{dqn_forward.1} parent=1 // pred_fallthru
      _
    // Predicated region
    $region6: #{dqn_forward.1} parent=1 // pred_check
      _
    $region7: #{dqn_forward.1} parent=1 // pred_check_branch
      %16 = sbr.rel (0) target = $region9
    $region8: #{dqn_forward.1} parent=1 // pred_region
      _
    $region9: #{dqn_forward.1} parent=1 // pred_fallthru
      _
    // Predicated region
    $region10: #{dqn_forward.1} parent=1 // pred_check
      _
    $region11: #{dqn_forward.1} parent=1 // pred_check_branch
      %18 = sbr.rel (0) target = $region13
    $region12: #{dqn_forward.1} parent=1 // pred_region
      _
    $region13: #{dqn_forward.1} parent=1 // pred_fallthru
      _
    // Predicated region
    $region14: #{dqn_forward.1} parent=1 // pred_check
      _
    $region15: #{dqn_forward.1} parent=1 // pred_check_branch
      %20 = sbr.rel (0) target = $region17
    $region16: #{dqn_forward.1} parent=1 // pred_region
      %22 = vsyncadd [#allocation3], 0
      %s23 = sshll.u32 %s3, 4
      %s24 = int_to_ptr.hbm [resolvable:$true] %s23
      %s25 = sshll.u32 [#allocation2], 4
      %s26 = int_to_ptr.vmem [resolvable:$true] %s25
      %31 = dma.hbm_to_vmem [thread:$0]  %s24, 1024, %s26, [#allocation3], 64, 64, 4
    $region17: #{dqn_forward.1} parent=1 // pred_fallthru
      _
    // Predicated region
    $region18: #{dqn_forward.1} parent=1 // pred_check
      _
    $region19: #{dqn_forward.1} parent=1 // pred_check_branch
      %33 = sbr.rel (0) target = $region21
    $region20: #{dqn_forward.1} parent=1 // pred_region
      _
    $region21: #{dqn_forward.1} parent=1 // pred_fallthru
      _
    // Predicated region
    $region22: #{dqn_forward.1} parent=1 // pred_check
      _
    $region23: #{dqn_forward.1} parent=1 // pred_check_branch
      %35 = sbr.rel (0) target = $region25
    $region24: #{dqn_forward.1} parent=1 // pred_region
      _
    $region25: #{dqn_forward.1} parent=1 // pred_fallthru
      _
    // Predicated region
    $region26: #{dqn_forward.1} parent=1 // pred_check
      _
    $region27: #{dqn_forward.1} parent=1 // pred_check_branch
      %37 = sbr.rel (0) target = $region29
    $region28: #{dqn_forward.1} parent=1 // pred_region
      _
    $region29: #{dqn_forward.1} parent=1 // pred_fallthru
      _
    // Predicated region
    $region30: #{dqn_forward.1} parent=1 // pred_check
      _
    $region31: #{dqn_forward.1} parent=1 // pred_check_branch
      %39 = sbr.rel (0) target = $region33
    $region32: #{dqn_forward.1} parent=1 // pred_region
      %41 = dma.done [#allocation3], 1024
    $region33: #{dqn_forward.1} parent=1 // pred_fallthru
      _
    %v43 = vld [vmem:[%s0] sm:$0xf]
    %v44 = vld [vmem:[%s1] sm:$0xf]
    %v45 = vld [vmem:[%s5] sm:$0x1]
    %v46 = vperm.slane %v45, 0
    %vm47 = vcmask 64512
    %v49 = vsel %vm47, %v43, 0
    %vm51 = vcmask 1043456
    %v53 = vsel %vm51, %v44, 0
    %55 = vmatpush.bf16.msra.mxu0 0
    %56 = vmatpush.bf16.msra.mxu0 0
    %57 = vmatpush.bf16.msra.mxu0 0
    %58 = vmatpush.bf16.msra.mxu0 0
    %59 = vmatpush.bf16.msra.mxu0 0
    %60 = vmatpush.bf16.msra.mxu0 0
    %61 = vmatpush.bf16.msra.mxu0 0
    %62 = vmatpush.bf16.msra.mxu0 %v53
    %63 = vmatmul.bf16.gmra.mxu0 %v49
    %v64 = vpop.f32.mrf.mxu0
    %v65 = vadd.f32 %v46, %v64
    %v66 = vpop.f32.mrf.mxu0
    %67 = vdwg.mxu0
    %v68 = vmax.f32 %v65, 0.0
    %v69 = vpack.c.bf16 %v68, %v68
    %v70 = vld [vmem:[%s2] sm:$0xf]
    %v71 = vld [vmem:[%s2 + $0x4] sm:$0xf]
    %v72 = vld [vmem:[%s2 + $0x8] sm:$0xf]
    %v73 = vld [vmem:[%s2 + $0xc] sm:$0xf]
    %v74 = vld [vmem:[%s2 + $0x10] sm:$0xf]
    %v75 = vld [vmem:[%s2 + $0x14] sm:$0xf]
    %v76 = vld [vmem:[%s2 + $0x18] sm:$0xf]
    %v77 = vld [vmem:[%s2 + $0x1c] sm:$0xf]
    %v78 = vld [vmem:[%s2 + $0x20] sm:$0xf]
    %v79 = vld [vmem:[%s2 + $0x24] sm:$0xf]
    %v80 = vld [vmem:[%s2 + $0x28] sm:$0xf]
    %v81 = vld [vmem:[%s2 + $0x2c] sm:$0xf]
    %v82 = vld [vmem:[%s2 + $0x30] sm:$0xf]
    %v83 = vld [vmem:[%s2 + $0x34] sm:$0xf]
    %v84 = vld [vmem:[%s2 + $0x38] sm:$0xf]
    %v85 = vld [vmem:[%s2 + $0x3c] sm:$0xf]
    %v86 = vld [vmem:[%s5 + $0x1] sm:$0x1]
    %v87 = vperm.slane %v86, 0
    %v104 = vunpack.c.l.b16 %v70
    %v105 = vunpack.c.l.b16 %v71
    %v106 = vunpack.c.l.b16 %v72
    %v107 = vunpack.c.l.b16 %v73
    %v108 = vunpack.c.l.b16 %v74
    %v109 = vunpack.c.l.b16 %v75
    %v110 = vunpack.c.l.b16 %v76
    %v111 = vunpack.c.l.b16 %v77
    %v112 = vunpack.c.l.b16 %v78
    %v113 = vunpack.c.l.b16 %v79
    %v114 = vunpack.c.l.b16 %v80
    %v115 = vunpack.c.l.b16 %v81
    %v116 = vunpack.c.l.b16 %v82
    %v117 = vunpack.c.l.b16 %v83
    %v118 = vunpack.c.l.b16 %v84
    %v119 = vunpack.c.l.b16 %v85
    %v120 = vpack.c.b16 %v105, %v104
    %v121 = vpack.c.b16 %v107, %v106
    %v122 = vpack.c.b16 %v109, %v108
    %v123 = vpack.c.b16 %v111, %v110
    %v124 = vpack.c.b16 %v113, %v112
    %v125 = vpack.c.b16 %v115, %v114
    %v126 = vpack.c.b16 %v117, %v116
    %v127 = vpack.c.b16 %v119, %v118
    %136 = vmatpush.bf16.msra.mxu0 %v127
    %137 = vmatpush.bf16.msra.mxu0 %v126
    %138 = vmatpush.bf16.msra.mxu0 %v125
    %139 = vmatpush.bf16.msra.mxu0 %v124
    %140 = vmatpush.bf16.msra.mxu0 %v123
    %141 = vmatpush.bf16.msra.mxu0 %v122
    %142 = vmatpush.bf16.msra.mxu0 %v121
    %143 = vmatpush.bf16.msra.mxu0 %v120
    %144 = vmatmul.bf16.gmra.mxu0 %v69
    %v145 = vpop.f32.mrf.mxu0
    %v146 = vadd.f32 %v87, %v145
    %v147 = vpop.f32.mrf.mxu0
    %148 = vdwg.mxu0
    %v149 = vmax.f32 %v146, 0.0
    %v150 = vpack.c.bf16 %v149, %v149
    %v151 = vld [vmem:[#allocation2] sm:$0xf]
    %v152 = vld [vmem:[#allocation2 + $0x4] sm:$0xf]
    %v153 = vld [vmem:[#allocation2 + $0x8] sm:$0xf]
    %v154 = vld [vmem:[#allocation2 + $0xc] sm:$0xf]
    %v155 = vld [vmem:[#allocation2 + $0x10] sm:$0xf]
    %v156 = vld [vmem:[#allocation2 + $0x14] sm:$0xf]
    %v157 = vld [vmem:[#allocation2 + $0x18] sm:$0xf]
    %v158 = vld [vmem:[#allocation2 + $0x1c] sm:$0xf]
    %v159 = vld [vmem:[#allocation2 + $0x20] sm:$0xf]
    %v160 = vld [vmem:[#allocation2 + $0x24] sm:$0xf]
    %v161 = vld [vmem:[#allocation2 + $0x28] sm:$0xf]
    %v162 = vld [vmem:[#allocation2 + $0x2c] sm:$0xf]
    %v163 = vld [vmem:[#allocation2 + $0x30] sm:$0xf]
    %v164 = vld [vmem:[#allocation2 + $0x34] sm:$0xf]
    %v165 = vld [vmem:[#allocation2 + $0x38] sm:$0xf]
    %v166 = vld [vmem:[#allocation2 + $0x3c] sm:$0xf]
    %v167 = vld [vmem:[%s5 + $0x2] sm:$0x1]
    %v168 = vperm.slane %v167, 0
    %v185 = vunpack.c.l.b16 %v151
    %v186 = vunpack.c.l.b16 %v152
    %v187 = vunpack.c.l.b16 %v153
    %v188 = vunpack.c.l.b16 %v154
    %v189 = vunpack.c.l.b16 %v155
    %v190 = vunpack.c.l.b16 %v156
    %v191 = vunpack.c.l.b16 %v157
    %v192 = vunpack.c.l.b16 %v158
    %v193 = vunpack.c.l.b16 %v159
    %v194 = vunpack.c.l.b16 %v160
    %v195 = vunpack.c.l.b16 %v161
    %v196 = vunpack.c.l.b16 %v162
    %v197 = vunpack.c.l.b16 %v163
    %v198 = vunpack.c.l.b16 %v164
    %v199 = vunpack.c.l.b16 %v165
    %v200 = vunpack.c.l.b16 %v166
    %v201 = vpack.c.b16 %v186, %v185
    %v202 = vpack.c.b16 %v188, %v187
    %v203 = vpack.c.b16 %v190, %v189
    %v204 = vpack.c.b16 %v192, %v191
    %v205 = vpack.c.b16 %v194, %v193
    %v206 = vpack.c.b16 %v196, %v195
    %v207 = vpack.c.b16 %v198, %v197
    %v208 = vpack.c.b16 %v200, %v199
    %217 = vmatpush.bf16.msra.mxu0 %v208
    %218 = vmatpush.bf16.msra.mxu0 %v207
    %219 = vmatpush.bf16.msra.mxu0 %v206
    %220 = vmatpush.bf16.msra.mxu0 %v205
    %221 = vmatpush.bf16.msra.mxu0 %v204
    %222 = vmatpush.bf16.msra.mxu0 %v203
    %223 = vmatpush.bf16.msra.mxu0 %v202
    %224 = vmatpush.bf16.msra.mxu0 %v201
    %225 = vmatmul.bf16.gmra.mxu0 %v150
    %v226 = vpop.f32.mrf.mxu0
    %v227 = vadd.f32 %v168, %v226
    %v228 = vpop.f32.mrf.mxu0
    %229 = vdwg.mxu0
    %v230 = vmax.f32 %v227, 0.0
    %v231 = vpack.c.bf16 %v230, %v230
    %v232 = vld [vmem:[%s4] sm:$0xf]
    %v233 = vld [vmem:[%s4 + $0x4] sm:$0xf]
    %v234 = vld [vmem:[%s4 + $0x8] sm:$0xf]
    %v235 = vld [vmem:[%s4 + $0xc] sm:$0xf]
    %v236 = vld [vmem:[%s4 + $0x10] sm:$0xf]
    %v237 = vld [vmem:[%s4 + $0x14] sm:$0xf]
    %v238 = vld [vmem:[%s4 + $0x18] sm:$0xf]
    %v239 = vld [vmem:[%s4 + $0x1c] sm:$0xf]
    %v240 = vld [vmem:[%s4 + $0x20] sm:$0xf]
    %v241 = vld [vmem:[%s4 + $0x24] sm:$0xf]
    %v242 = vld [vmem:[%s4 + $0x28] sm:$0xf]
    %v243 = vld [vmem:[%s4 + $0x2c] sm:$0xf]
    %v244 = vld [vmem:[%s4 + $0x30] sm:$0xf]
    %v245 = vld [vmem:[%s4 + $0x34] sm:$0xf]
    %v246 = vld [vmem:[%s4 + $0x38] sm:$0xf]
    %v247 = vld [vmem:[%s4 + $0x3c] sm:$0xf]
    %v248 = vld [vmem:[%s6] sm:$0x1]
    %v250 = vperm.slane %v248, 0
    %v268 = vunpack.c.l.b16 %v232
    %v269 = vunpack.c.l.b16 %v233
    %v270 = vunpack.c.l.b16 %v234
    %v271 = vunpack.c.l.b16 %v235
    %v272 = vunpack.c.l.b16 %v236
    %v273 = vunpack.c.l.b16 %v237
    %v274 = vunpack.c.l.b16 %v238
    %v275 = vunpack.c.l.b16 %v239
    %v276 = vunpack.c.l.b16 %v240
    %v277 = vunpack.c.l.b16 %v241
    %v278 = vunpack.c.l.b16 %v242
    %v279 = vunpack.c.l.b16 %v243
    %v280 = vunpack.c.l.b16 %v244
    %v281 = vunpack.c.l.b16 %v245
    %v282 = vunpack.c.l.b16 %v246
    %v283 = vunpack.c.l.b16 %v247
    %v284 = vpack.c.b16 %v269, %v268
    %v285 = vpack.c.b16 %v271, %v270
    %v286 = vpack.c.b16 %v273, %v272
    %v287 = vpack.c.b16 %v275, %v274
    %v288 = vpack.c.b16 %v277, %v276
    %v289 = vpack.c.b16 %v279, %v278
    %v290 = vpack.c.b16 %v281, %v280
    %v291 = vpack.c.b16 %v283, %v282
    %300 = vmatpush.bf16.msra.mxu0 %v291
    %301 = vmatpush.bf16.msra.mxu0 %v290
    %302 = vmatpush.bf16.msra.mxu0 %v289
    %303 = vmatpush.bf16.msra.mxu0 %v288
    %304 = vmatpush.bf16.msra.mxu0 %v287
    %305 = vmatpush.bf16.msra.mxu0 %v286
    %306 = vmatpush.bf16.msra.mxu0 %v285
    %307 = vmatpush.bf16.msra.mxu0 %v284
    %308 = vmatmul.bf16.gmra.mxu0 %v231
    %v309 = vpop.f32.mrf.mxu0
    %v310 = vadd.f32 %v250, %v309
    %v311 = vpop.f32.mrf.mxu0
    %312 = vdwg.mxu0
    %313 = vst.msk [vmem:[%s7] sm:$0xff] %vm47, %v310
    // Predicated region
    $region34: #{dqn_forward.1} parent=1 // pred_check
      _
    $region35: #{dqn_forward.1} parent=1 // pred_check_branch
      %315 = sbr.rel (0) target = $region37
    $region36: #{dqn_forward.1} parent=1 // pred_region
      _
    $region37: #{dqn_forward.1} parent=1 // pred_fallthru
      _
    // Predicated region
    $region38: #{dqn_forward.1} parent=1 // pred_check
      _
    $region39: #{dqn_forward.1} parent=1 // pred_check_branch
      %317 = sbr.rel (0) target = $region41
    $region40: #{dqn_forward.1} parent=1 // pred_region
      _
    $region41: #{dqn_forward.1} parent=1 // pred_fallthru
      _
    %318 = vsyncpa [#allocation3], 1

</llo_original>
